<compile_context>
chip_gen: v7x
topology: tpu7x:2x2x1
jax: 0.10.0
libtpu: 0.0.40
codegen_flags: <defaults>
</compile_context>

<pallas_src>
import functools

import jax
import jax.numpy as jnp
from jax import lax
from jax.experimental import pallas as pl
from jax.experimental.pallas import tpu as pltpu


def _round_up(x, m):
    return (x + m - 1) // m * m


def _cdiv(a, b):
    return (a + b - 1) // b


def _motion_loss_kernel(pred_ref, gt_ref, out_ref, *, vec_length, t_valid,
                        eps, t_pad, chunk_rows, need_mask):
    """One row-block of the (unscaled, un-meaned) loss.

    pred_ref / gt_ref: [3, R_blk, T_pad] blocks (coord x rows x time-lanes).
    out_ref:           [1, 8, 128] per-tile partial-sum block (lane dense).
    """
    r_blk = pred_ref.shape[1]
    n_chunks = r_blk // chunk_rows
    # roll by (T_pad - vl) so rolled[t] == original[t + vl] for valid t.
    shift = (t_pad - vec_length) % t_pad
    eps2 = eps * eps

    # Static per-coordinate Ref views (no load yet; zero runtime cost).
    p0, p1, p2 = pred_ref.at[0], pred_ref.at[1], pred_ref.at[2]
    g0, g1, g2 = gt_ref.at[0], gt_ref.at[1], gt_ref.at[2]

    # Mask only when the time padding cannot absorb the roll wrap-around.
    if need_mask:
        col = lax.broadcasted_iota(jnp.int32, (chunk_rows, t_pad), 1)
        valid = col < t_valid
    else:
        valid = None

    def motion_vec(r0, r1, r2, rows):
        # start coords (cast in-kernel; free on the VPU)
        s0 = r0[rows, :].astype(jnp.float32)
        s1 = r1[rows, :].astype(jnp.float32)
        s2 = r2[rows, :].astype(jnp.float32)
        # end coords = time-shifted view via XLU lane rotation (no extra DMA)
        e0 = pltpu.roll(s0, shift=shift, axis=1)
        e1 = pltpu.roll(s1, shift=shift, axis=1)
        e2 = pltpu.roll(s2, shift=shift, axis=1)
        # cross product
        x = s1 * e2 - s2 * e1
        y = s2 * e0 - s0 * e2
        z = s0 * e1 - s1 * e0
        # Single EUP rsqrt per element (the reference's *1000 scale is
        # hoisted to the wrapper; eps^2 keeps zero vectors finite).
        inv = lax.rsqrt(x * x + y * y + z * z + eps2)
        return x * inv, y * inv, z * inv

    def chunk_body(c, acc):
        start = pl.multiple_of(c * chunk_rows, chunk_rows)
        rows = pl.ds(start, chunk_rows)
        px, py, pz = motion_vec(p0, p1, p2, rows)
        qx, qy, qz = motion_vec(g0, g1, g2, rows)
        d = jnp.abs(px - qx) + jnp.abs(py - qy) + jnp.abs(pz - qz)
        if need_mask:
            d = jnp.where(valid, d, 0.0)
        return acc + jnp.sum(d)

    if n_chunks == 1:
        total = chunk_body(jnp.int32(0), jnp.float32(0.0))
    else:
        total = lax.fori_loop(0, n_chunks, chunk_body, jnp.float32(0.0),
                              unroll=min(n_chunks, 8))

    out_ref[...] = jnp.full(out_ref.shape, total, dtype=jnp.float32)


def motion_loss(pred_3d, gt_3d, vec_length, eps=1e-6, block_bytes=2 << 20,
                input_dtype=None):
    """Pallas implementation of MotionLoss.forward (inputs are BCTV)."""
    B, C, T, V = pred_3d.shape
    assert gt_3d.shape == pred_3d.shape
    assert V >= 3, "last (V) axis is indexed at 0,1,2 by the reference module"
    assert 0 < vec_length < T
    Tm = T - vec_length
    BC = B * C

    # Kernel input dtype: default keeps the input dtype (f32 -> bit-faithful
    # math).  Passing jnp.bfloat16 halves kernel HBM reads (big win on
    # HBM-bound v5e/v6e) at some precision cost near-parallel motion vectors.
    if input_dtype is None:
        input_dtype = pred_3d.dtype
    itemsize = jnp.dtype(input_dtype).itemsize

    # Lane-dense layout: time padded to a multiple of 128 lanes.
    T_pad = _round_up(T, 128)
    bc_pad8 = _round_up(BC, 8)

    # Rows per grid step: ~block_bytes (2 MiB default) per input block so the
    # ~0.35us/step overhead is amortized; 2 inputs x 2 pipeline buffers stays
    # well under the explicit VMEM limit below on every generation.
    rows_budget = max(8, block_bytes // (3 * T_pad * itemsize) // 8 * 8)
    G = _cdiv(bc_pad8, rows_budget)
    if bc_pad8 >= 16:
        # Keep >= 2 row-blocks so the "parallel" grid axis spans both v7x
        # TensorCores (neutral on single-TC v5e/v6e).
        G = max(G, 2)
    if _cdiv(bc_pad8, G) >= 64:
        row_align = 64                    # allows 64-row in-block chunks
    else:
        row_align = 16 if itemsize == 2 else 8   # bf16 sublane packing
    R_blk = _round_up(_cdiv(bc_pad8, G), row_align)
    BC_pad = R_blk * G

    # In-block row chunk: keeps live f32 temporaries (~26 chunk-sized arrays)
    # bounded to a few MiB even with large DMA blocks (v7x: 64 MiB VMEM).
    chunk_cap = max(8, ((4 << 20) // (26 * T_pad * 4)) // 8 * 8)
    chunk_rows = min(64, R_blk, chunk_cap)
    while R_blk % chunk_rows:
        chunk_rows -= 8

    # TODO(synk): add a time-tiling path (with a vec_length column halo) for
    # very large T; currently each block spans the full padded time axis.

    # If the time padding covers vec_length, every invalid column has a zero
    # start or a zero rolled end -> contributes exactly 0, so no mask needed.
    need_mask = (T_pad - T) < vec_length

    def prep(data):
        # One transpose(+cast)+pad per side, inside the same jit as the
        # pallas_call so XLA can fuse/overlap prep for pred and gt.
        # TODO(synk): best case is for the producer to emit [3, B*C, T]
        # directly; this prep is an extra HBM pass (dominant on v5e/v6e).
        x = data[..., :3].reshape(BC, T, 3).astype(input_dtype)
        x = jnp.transpose(x, (2, 0, 1))                      # [3, BC, T]
        if BC_pad != BC or T_pad != T:
            x = jnp.pad(x, ((0, 0), (0, BC_pad - BC), (0, T_pad - T)))
        return x

    pred_p = prep(pred_3d)
    gt_p = prep(gt_3d)

    kernel = functools.partial(
        _motion_loss_kernel, vec_length=int(vec_length), t_valid=Tm,
        eps=float(eps), t_pad=T_pad, chunk_rows=chunk_rows,
        need_mask=need_mask)

    cost = pl.CostEstimate(
        flops=int(50 * 3 * BC * Tm),
        transcendentals=int(2 * BC * Tm),
        bytes_accessed=int(2 * 3 * BC_pad * T_pad * itemsize
                           + G * 8 * 128 * 4),
    )

    partials = pl.pallas_call(
        kernel,
        out_shape=jax.ShapeDtypeStruct((G, 8, 128), jnp.float32),
        grid=(G,),
        in_specs=[
            pl.BlockSpec((3, R_blk, T_pad), lambda i: (0, i, 0)),
            pl.BlockSpec((3, R_blk, T_pad), lambda i: (0, i, 0)),
        ],
        out_specs=pl.BlockSpec((1, 8, 128), lambda i: (i, 0, 0)),
        compiler_params=pltpu.CompilerParams(
            dimension_semantics=("parallel",),
            vmem_limit_bytes=48 * 1024 * 1024),
        cost_estimate=cost,
    )(pred_p, gt_p)

    # Hoisted scale and mean: mean(|1000*a - 1000*b|) == 1000*sum(|a-b|)/count.
    count = 3 * BC * Tm
    return jnp.sum(partials[:, 0, 0]) * (1000.0 / count)


def motion_loss_ref(pred_3d, gt_3d, vec_length, eps=1e-6):
    """Pure-JAX reference mirroring the PyTorch module exactly."""

    def motion_vec(data):
        T = data.shape[2]
        start = data[:, :, :T - vec_length, :]
        end = data[:, :, vec_length:, :]
        x = start[..., 1] * end[..., 2] - start[..., 2] * end[..., 1]
        y = start[..., 2] * end[..., 0] - start[..., 0] * end[..., 2]
        z = start[..., 0] * end[..., 1] - start[..., 1] * end[..., 0]
        norm = jnp.stack([x, y, z], axis=1)
        norm = norm / (jnp.linalg.norm(norm, axis=1, keepdims=True) + eps)
        return norm * 1000.0

    return jnp.mean(jnp.abs(motion_vec(pred_3d) - motion_vec(gt_3d)))


if __name__ == "__main__":
    # Module has no learnable parameters; only vec_length / eps hyperparams.
    B, C, T, V = 2, 4, 16, 3
    vec_length = 2

    key = jax.random.PRNGKey(0)
    k1, k2 = jax.random.split(key)
    pred_3d = jax.random.normal(k1, (B, C, T, V), dtype=jnp.float32)
    gt_3d = jax.random.normal(k2, (B, C, T, V), dtype=jnp.float32)

    loss_fn = jax.jit(functools.partial(motion_loss, vec_length=vec_length))
    loss = loss_fn(pred_3d, gt_3d)
    jax.block_until_ready(loss)

    ref = motion_loss_ref(pred_3d, gt_3d, vec_length)
    # f32 path with full-precision rsqrt; only eps handling / summation order
    # differ from the reference, so a tight tolerance is fine.
    tol = 1e-3 * (1.0 + abs(float(ref)))
    assert abs(float(loss) - float(ref)) < tol, (float(loss), float(ref))

    print("KERNEL_OK")
</pallas_src>

<mosaic_0001>
module attributes {stable_mosaic.version = 11 : i64} {
  func.func @_motion_loss_kernel(%arg0: i32, %arg1: memref<3x8x128xf32, #tpu.memory_space<vmem>>, %arg2: memref<3x8x128xf32, #tpu.memory_space<vmem>>, %arg3: memref<1x8x128xf32, #tpu.memory_space<vmem>>) attributes {dimension_semantics = [#tpu.dimension_semantics<parallel>], iteration_bounds = array<i64: 1>, scalar_prefetch = 0 : i64, scratch_operands = 0 : i64, tpu.core_type = #tpu.core_type<tc>, window_params = [{transform_indices = @transform_0, window_bounds = array<i64: 3, 8, 128>}, {transform_indices = @transform_1, window_bounds = array<i64: 3, 8, 128>}, {transform_indices = @transform_2, window_bounds = array<i64: 1, 8, 128>}]} {
    %c0_i32 = arith.constant 0 : i32
    %c8_i32 = arith.constant 8 : i32
    %0 = arith.muli %c0_i32, %c8_i32 : i32
    %1 = tpu.assume_multiple %0, 8 : i32
    %c0_i32_0 = arith.constant 0 : i32
    %c0_i32_1 = arith.constant 0 : i32
    %c0_i32_2 = arith.constant 0 : i32
    %2 = tpu.memref_slice %arg1[%c0_i32_0, %c0_i32_1, %c0_i32_2] : memref<3x8x128xf32, #tpu.memory_space<vmem>> -> memref<1x8x128xf32, #tpu.memory_space<vmem>>
    %3 = tpu.memref_squeeze %2 : memref<1x8x128xf32, #tpu.memory_space<vmem>> -> memref<8x128xf32, #tpu.memory_space<vmem>>
    %4 = arith.index_cast %1 : i32 to index
    %c0 = arith.constant 0 : index
    %5 = vector.load %3[%4, %c0] : memref<8x128xf32, #tpu.memory_space<vmem>>, vector<8x128xf32>
    %c1_i32 = arith.constant 1 : i32
    %c0_i32_3 = arith.constant 0 : i32
    %c0_i32_4 = arith.constant 0 : i32
    %6 = tpu.memref_slice %arg1[%c1_i32, %c0_i32_3, %c0_i32_4] : memref<3x8x128xf32, #tpu.memory_space<vmem>> -> memref<1x8x128xf32, #tpu.memory_space<vmem>>
    %7 = tpu.memref_squeeze %6 : memref<1x8x128xf32, #tpu.memory_space<vmem>> -> memref<8x128xf32, #tpu.memory_space<vmem>>
    %8 = arith.index_cast %1 : i32 to index
    %c0_5 = arith.constant 0 : index
    %9 = vector.load %7[%8, %c0_5] : memref<8x128xf32, #tpu.memory_space<vmem>>, vector<8x128xf32>
    %c2_i32 = arith.constant 2 : i32
    %c0_i32_6 = arith.constant 0 : i32
    %c0_i32_7 = arith.constant 0 : i32
    %10 = tpu.memref_slice %arg1[%c2_i32, %c0_i32_6, %c0_i32_7] : memref<3x8x128xf32, #tpu.memory_space<vmem>> -> memref<1x8x128xf32, #tpu.memory_space<vmem>>
    %11 = tpu.memref_squeeze %10 : memref<1x8x128xf32, #tpu.memory_space<vmem>> -> memref<8x128xf32, #tpu.memory_space<vmem>>
    %12 = arith.index_cast %1 : i32 to index
    %c0_8 = arith.constant 0 : index
    %13 = vector.load %11[%12, %c0_8] : memref<8x128xf32, #tpu.memory_space<vmem>>, vector<8x128xf32>
    %c126_i32 = arith.constant 126 : i32
    %14 = tpu.dynamic_rotate %5 by %c126_i32 dim 1 : vector<8x128xf32>, i32 -> vector<8x128xf32>
    %c126_i32_9 = arith.constant 126 : i32
    %15 = tpu.dynamic_rotate %9 by %c126_i32_9 dim 1 : vector<8x128xf32>, i32 -> vector<8x128xf32>
    %c126_i32_10 = arith.constant 126 : i32
    %16 = tpu.dynamic_rotate %13 by %c126_i32_10 dim 1 : vector<8x128xf32>, i32 -> vector<8x128xf32>
    %17 = arith.mulf %9, %16 : vector<8x128xf32>
    %18 = arith.mulf %13, %15 : vector<8x128xf32>
    %19 = arith.subf %17, %18 : vector<8x128xf32>
    %20 = arith.mulf %13, %14 : vector<8x128xf32>
    %21 = arith.mulf %5, %16 : vector<8x128xf32>
    %22 = arith.subf %20, %21 : vector<8x128xf32>
    %23 = arith.mulf %5, %15 : vector<8x128xf32>
    %24 = arith.mulf %9, %14 : vector<8x128xf32>
    %25 = arith.subf %23, %24 : vector<8x128xf32>
    %26 = arith.mulf %19, %19 : vector<8x128xf32>
    %27 = arith.mulf %22, %22 : vector<8x128xf32>
    %28 = arith.addf %26, %27 : vector<8x128xf32>
    %29 = arith.mulf %25, %25 : vector<8x128xf32>
    %30 = arith.addf %28, %29 : vector<8x128xf32>
    %cst = arith.constant 9.99999996E-13 : f32
    %31 = vector.broadcast %cst : f32 to vector<8x128xf32>
    %32 = arith.addf %30, %31 : vector<8x128xf32>
    %33 = math.rsqrt %32 : vector<8x128xf32>
    %34 = arith.mulf %19, %33 : vector<8x128xf32>
    %35 = arith.mulf %22, %33 : vector<8x128xf32>
    %36 = arith.mulf %25, %33 : vector<8x128xf32>
    %c0_i32_11 = arith.constant 0 : i32
    %c0_i32_12 = arith.constant 0 : i32
    %c0_i32_13 = arith.constant 0 : i32
    %37 = tpu.memref_slice %arg2[%c0_i32_11, %c0_i32_12, %c0_i32_13] : memref<3x8x128xf32, #tpu.memory_space<vmem>> -> memref<1x8x128xf32, #tpu.memory_space<vmem>>
    %38 = tpu.memref_squeeze %37 : memref<1x8x128xf32, #tpu.memory_space<vmem>> -> memref<8x128xf32, #tpu.memory_space<vmem>>
    %39 = arith.index_cast %1 : i32 to index
    %c0_14 = arith.constant 0 : index
    %40 = vector.load %38[%39, %c0_14] : memref<8x128xf32, #tpu.memory_space<vmem>>, vector<8x128xf32>
    %c1_i32_15 = arith.constant 1 : i32
    %c0_i32_16 = arith.constant 0 : i32
    %c0_i32_17 = arith.constant 0 : i32
    %41 = tpu.memref_slice %arg2[%c1_i32_15, %c0_i32_16, %c0_i32_17] : memref<3x8x128xf32, #tpu.memory_space<vmem>> -> memref<1x8x128xf32, #tpu.memory_space<vmem>>
    %42 = tpu.memref_squeeze %41 : memref<1x8x128xf32, #tpu.memory_space<vmem>> -> memref<8x128xf32, #tpu.memory_space<vmem>>
    %43 = arith.index_cast %1 : i32 to index
    %c0_18 = arith.constant 0 : index
    %44 = vector.load %42[%43, %c0_18] : memref<8x128xf32, #tpu.memory_space<vmem>>, vector<8x128xf32>
    %c2_i32_19 = arith.constant 2 : i32
    %c0_i32_20 = arith.constant 0 : i32
    %c0_i32_21 = arith.constant 0 : i32
    %45 = tpu.memref_slice %arg2[%c2_i32_19, %c0_i32_20, %c0_i32_21] : memref<3x8x128xf32, #tpu.memory_space<vmem>> -> memref<1x8x128xf32, #tpu.memory_space<vmem>>
    %46 = tpu.memref_squeeze %45 : memref<1x8x128xf32, #tpu.memory_space<vmem>> -> memref<8x128xf32, #tpu.memory_space<vmem>>
    %47 = arith.index_cast %1 : i32 to index
    %c0_22 = arith.constant 0 : index
    %48 = vector.load %46[%47, %c0_22] : memref<8x128xf32, #tpu.memory_space<vmem>>, vector<8x128xf32>
    %c126_i32_23 = arith.constant 126 : i32
    %49 = tpu.dynamic_rotate %40 by %c126_i32_23 dim 1 : vector<8x128xf32>, i32 -> vector<8x128xf32>
    %c126_i32_24 = arith.constant 126 : i32
    %50 = tpu.dynamic_rotate %44 by %c126_i32_24 dim 1 : vector<8x128xf32>, i32 -> vector<8x128xf32>
    %c126_i32_25 = arith.constant 126 : i32
    %51 = tpu.dynamic_rotate %48 by %c126_i32_25 dim 1 : vector<8x128xf32>, i32 -> vector<8x128xf32>
    %52 = arith.mulf %44, %51 : vector<8x128xf32>
    %53 = arith.mulf %48, %50 : vector<8x128xf32>
    %54 = arith.subf %52, %53 : vector<8x128xf32>
    %55 = arith.mulf %48, %49 : vector<8x128xf32>
    %56 = arith.mulf %40, %51 : vector<8x128xf32>
    %57 = arith.subf %55, %56 : vector<8x128xf32>
    %58 = arith.mulf %40, %50 : vector<8x128xf32>
    %59 = arith.mulf %44, %49 : vector<8x128xf32>
    %60 = arith.subf %58, %59 : vector<8x128xf32>
    %61 = arith.mulf %54, %54 : vector<8x128xf32>
    %62 = arith.mulf %57, %57 : vector<8x128xf32>
    %63 = arith.addf %61, %62 : vector<8x128xf32>
    %64 = arith.mulf %60, %60 : vector<8x128xf32>
    %65 = arith.addf %63, %64 : vector<8x128xf32>
    %cst_26 = arith.constant 9.99999996E-13 : f32
    %66 = vector.broadcast %cst_26 : f32 to vector<8x128xf32>
    %67 = arith.addf %65, %66 : vector<8x128xf32>
    %68 = math.rsqrt %67 : vector<8x128xf32>
    %69 = arith.mulf %54, %68 : vector<8x128xf32>
    %70 = arith.mulf %57, %68 : vector<8x128xf32>
    %71 = arith.mulf %60, %68 : vector<8x128xf32>
    %72 = arith.subf %34, %69 : vector<8x128xf32>
    %73 = math.absf %72 : vector<8x128xf32>
    %74 = arith.subf %35, %70 : vector<8x128xf32>
    %75 = math.absf %74 : vector<8x128xf32>
    %76 = arith.addf %73, %75 : vector<8x128xf32>
    %77 = arith.subf %36, %71 : vector<8x128xf32>
    %78 = math.absf %77 : vector<8x128xf32>
    %79 = arith.addf %76, %78 : vector<8x128xf32>
    %80 = vector.shape_cast %79 : vector<8x128xf32> to vector<1x8x128xf32>
    %cst_27 = arith.constant dense<0.000000e+00> : vector<1xf32>
    %81 = vector.multi_reduction <add>, %80, %cst_27 [1, 2] : vector<1x8x128xf32> to vector<1xf32>
    %82 = vector.shape_cast %81 : vector<1xf32> to vector<1x1x1xf32>
    %83 = vector.extract %82[0, 0, 0] : f32 from vector<1x1x1xf32>
    %cst_28 = arith.constant 0.000000e+00 : f32
    %84 = arith.addf %cst_28, %83 : f32
    %85 = vector.broadcast %84 : f32 to vector<1x8x128xf32>
    %c0_29 = arith.constant 0 : index
    %c0_30 = arith.constant 0 : index
    %c0_31 = arith.constant 0 : index
    %86 = vector.load %arg3[%c0_29, %c0_30, %c0_31] : memref<1x8x128xf32, #tpu.memory_space<vmem>>, vector<1x8x128xf32>
    tpu.vector_store %arg3[%c0_29, %c0_30, %c0_31], %85 {strides = array<i32>} : memref<1x8x128xf32, #tpu.memory_space<vmem>>, vector<1x8x128xf32>,
    return
  }
  func.func @transform_0(%arg0: i32) -> (i32, i32, i32) {
    %c0_i32 = arith.constant 0 : i32
    %c0_i32_0 = arith.constant 0 : i32
    %c0_i32_1 = arith.constant 0 : i32
    return %c0_i32, %arg0, %c0_i32_0 : i32, i32, i32
  }
  func.func @transform_1(%arg0: i32) -> (i32, i32, i32) {
    %c0_i32 = arith.constant 0 : i32
    %c0_i32_0 = arith.constant 0 : i32
    %c0_i32_1 = arith.constant 0 : i32
    return %c0_i32, %arg0, %c0_i32_0 : i32, i32, i32
  }
  func.func @transform_2(%arg0: i32) -> (i32, i32, i32) {
    %c0_i32 = arith.constant 0 : i32
    %c0_i32_0 = arith.constant 0 : i32
    %c0_i32_1 = arith.constant 0 : i32
    return %arg0, %c0_i32, %c0_i32_0 : i32, i32, i32
  }
}

</mosaic_0001>

<llo_original>
// kernel: motion_loss.1
$region0: #{motion_loss.1}
  #allocation0 [shape = 'u32[]', space=smem, size = 0x4, offset = 0x4, fixed_abs, tag = 'smem constant byte address 0x4 - core index']
  #allocation1 [shape = 'u32[144,128]{1,0:T(1,128)}', space=vmem, size = 0x12000, scoped, tag = 'internal scratch']
  %s0 = inlined_call_operand.vmem [shape: f32[3,8,128], index: 0, kind: input, shape index: {}]
  %s1 = inlined_call_operand.vmem [shape: f32[3,8,128], index: 1, kind: input, shape index: {}]
  %s2 = inlined_call_operand.vmem [shape: f32[1,8,128], index: 2, kind: output, shape index: {}]
  %s3 = sld [smem:[#allocation0]]
  $region18: #{motion_loss.1} parent=0
    _
  %s5 = ssub.s32 1, %s3
  %s6 = scalar_select 0, %s5, %s3
  // Predicated region
  $region2: #{motion_loss.1} parent=0 // pred_check
    _
  $region3: #{motion_loss.1} parent=0 // pred_check_branch
    %8 = sbr.rel (0) target = $region5
  $region4: #{motion_loss.1} parent=0 // pred_region
    _
  $region5: #{motion_loss.1} parent=0 // pred_fallthru
    _
  // Predicated region
  $region6: #{motion_loss.1} parent=0 // pred_check
    _
  $region7: #{motion_loss.1} parent=0 // pred_check_branch
    %10 = sbr.rel (0) target = $region9
  $region8: #{motion_loss.1} parent=0 // pred_region
    _
  $region9: #{motion_loss.1} parent=0 // pred_fallthru
    _
  %v11 = vld [vmem:[%s0] sm:$0xff]
  %s12 = scalar_lea.vmem %s0, 8
  %v13 = vld [vmem:[%s12] sm:$0xff]
  %s14 = scalar_lea.vmem %s0, 16
  %v15 = vld [vmem:[%s14] sm:$0xff]
  %16 = vrot.lane.b32.xlu0 %v11, 126
  %v17 = vpop.permute.xlu0 %16
  %18 = vrot.lane.b32.xlu0 %v13, 126
  %v19 = vpop.permute.xlu0 %18
  %20 = vrot.lane.b32.xlu0 %v15, 126
  %v21 = vpop.permute.xlu0 %20
  %v22 = vmul.f32 %v13, %v21
  %v23 = vmul.f32 %v15, %v19
  %v24 = vsub.f32 %v22, %v23
  %v25 = vmul.f32 %v15, %v17
  %v26 = vmul.f32 %v11, %v21
  %v27 = vsub.f32 %v25, %v26
  %v28 = vmul.f32 %v11, %v19
  %v29 = vmul.f32 %v13, %v17
  %v30 = vsub.f32 %v28, %v29
  %v31 = vmul.f32 %v24, %v24
  %v32 = vmul.f32 %v27, %v27
  %v33 = vadd.f32 %v31, %v32
  %v34 = vmul.f32 %v30, %v30
  %v35 = vadd.f32 %v33, %v34
  %v36 = vadd.f32 %v35, 1e-12
  %v37 = vrsqrt.pop %v36
  %v38 = vmul.f32 %v24, %v37
  %v39 = vmul.f32 %v27, %v37
  %v40 = vmul.f32 %v30, %v37
  %v41 = vld [vmem:[%s1] sm:$0xff]
  %s42 = scalar_lea.vmem %s1, 8
  %v43 = vld [vmem:[%s42] sm:$0xff]
  %s44 = scalar_lea.vmem %s1, 16
  %v45 = vld [vmem:[%s44] sm:$0xff]
  %46 = vrot.lane.b32.xlu0 %v41, 126
  %v47 = vpop.permute.xlu0 %46
  %48 = vrot.lane.b32.xlu0 %v43, 126
  %v49 = vpop.permute.xlu0 %48
  %50 = vrot.lane.b32.xlu0 %v45, 126
  %v51 = vpop.permute.xlu0 %50
  %v52 = vmul.f32 %v43, %v51
  %v53 = vmul.f32 %v45, %v49
  %v54 = vsub.f32 %v52, %v53
  %v55 = vmul.f32 %v45, %v47
  %v56 = vmul.f32 %v41, %v51
  %v57 = vsub.f32 %v55, %v56
  %v58 = vmul.f32 %v41, %v49
  %v59 = vmul.f32 %v43, %v47
  %v60 = vsub.f32 %v58, %v59
  %v61 = vmul.f32 %v54, %v54
  %v62 = vmul.f32 %v57, %v57
  %v63 = vadd.f32 %v61, %v62
  %v64 = vmul.f32 %v60, %v60
  %v65 = vadd.f32 %v63, %v64
  %v66 = vadd.f32 %v65, 1e-12
  %v67 = vrsqrt.pop %v66
  %v68 = vmul.f32 %v54, %v67
  %v69 = vmul.f32 %v57, %v67
  %v70 = vmul.f32 %v60, %v67
  %v71 = vsub.f32 %v38, %v68
  %v72 = vand.u32 2147483647, %v71
  %v73 = vsub.f32 %v39, %v69
  %v74 = vand.u32 2147483647, %v73
  %v75 = vadd.f32 %v72, %v74
  %v76 = vsub.f32 %v40, %v70
  %v77 = vand.u32 2147483647, %v76
  %v78 = vadd.f32 %v75, %v77
  %79 = vadd.xlane.f32.xlu0 %v78
  %v80 = vpop.xlane.xlu0 %79
  %v81 = vrot.slane %v80, 4
  %v82 = vadd.f32 %v80, %v81
  %v83 = vrot.slane %v82, 2
  %v84 = vadd.f32 %v82, %v83
  %v85 = vrot.slane %v84, 1
  %v86 = vadd.f32 %v84, %v85
  %s87 = vtos %v86
  %s88 = sadd.f32 %s87, 0.0
  %v89 = vstv %s88
  %90 = vst [vmem:[%s2] sm:$0xff] %v89
  // Predicated region
  $region10: #{motion_loss.1} parent=0 // pred_check
    _
  $region11: #{motion_loss.1} parent=0 // pred_check_branch
    %92 = sbr.rel (0) target = $region13
  $region12: #{motion_loss.1} parent=0 // pred_region
    _
  $region13: #{motion_loss.1} parent=0 // pred_fallthru
    _
  // Predicated region
  $region14: #{motion_loss.1} parent=0 // pred_check
    _
  $region15: #{motion_loss.1} parent=0 // pred_check_branch
    %94 = sbr.rel (0) target = $region17
  $region16: #{motion_loss.1} parent=0 // pred_region
    _
  $region17: #{motion_loss.1} parent=0 // pred_fallthru
    _

</llo_original>
